<compile_context>
chip_gen: v6e
topology: v6e:2x2x1
jax: 0.10.0
libtpu: 0.0.40
codegen_flags: <defaults>
</compile_context>

<pallas_src>
import functools

import jax
import jax.numpy as jnp
from jax.experimental import pallas as pl
from jax.experimental.pallas import tpu as pltpu


def _moving_avg_kernel(x_ref, out_ref, xp_ref, *, kernel_size, seq_len, out_len):
    h = (kernel_size - 1) // 2
    tc = x_ref.shape[-1]

    # Cast once (hoisted out of the accumulation loop) and write the
    # replicate-padded series into the VMEM scratch a single time.
    x = x_ref[0].astype(jnp.float32)                        # (L, TC)
    xp_ref[h:h + seq_len, :] = x
    if h > 0:
        first = x[0:1, :]
        last = x[seq_len - 1:seq_len, :]
        xp_ref[0:h, :] = jnp.broadcast_to(first, (h, tc))
        xp_ref[h + seq_len:h + seq_len + h, :] = jnp.broadcast_to(last, (h, tc))

    # k-term sliding sum via statically-offset reads of the scratch.
    acc = xp_ref[0:out_len, :]
    for d in range(1, kernel_size):
        acc = acc + xp_ref[d:d + out_len, :]
    out_ref[0] = (acc * (1.0 / kernel_size)).astype(out_ref.dtype)


def moving_avg(x, kernel_size, stride=1):
    """x: (B, L, C). Returns the moving average, shape (B, L_out, C)."""
    b, l, c = x.shape
    h = (kernel_size - 1) // 2
    lp = l + 2 * h                        # padded time length
    l1 = lp - kernel_size + 1             # stride-1 output length
    n_out = (lp - kernel_size) // stride + 1

    # Lane-dense channel tiling: pad C up to a multiple of 128.
    lane = 128
    c_pad = ((c + lane - 1) // lane) * lane
    if c_pad != c:
        x = jnp.pad(x, ((0, 0), (0, 0), (0, c_pad - c)))

    # Pick the largest channel tile (multiple of 128) keeping the per-step
    # VMEM footprint (double-buffered in/out blocks + f32 scratch) modest.
    in_b = x.dtype.itemsize
    budget = 8 * 1024 * 1024
    tc = 128
    for cand in (1024, 512, 256, 128):
        if c_pad % cand:
            continue
        est = cand * (2 * l * in_b + 2 * l1 * in_b + lp * 4)
        if est <= budget:
            tc = cand
            break

    kernel = functools.partial(
        _moving_avg_kernel, kernel_size=kernel_size, seq_len=l, out_len=l1
    )

    mean1 = pl.pallas_call(
        kernel,
        out_shape=jax.ShapeDtypeStruct((b, l1, c_pad), x.dtype),
        grid_spec=pltpu.PrefetchScalarGridSpec(
            num_scalar_prefetch=0,
            grid=(b, c_pad // tc),
            in_specs=[pl.BlockSpec((1, l, tc), lambda i, j: (i, 0, j))],
            out_specs=pl.BlockSpec((1, l1, tc), lambda i, j: (i, 0, j)),
            scratch_shapes=[pltpu.VMEM((lp, tc), jnp.float32)],
        ),
        compiler_params=pltpu.CompilerParams(
            dimension_semantics=("parallel", "parallel"),
            vmem_limit_bytes=32 * 1024 * 1024,
        ),
    )(x)

    # stride-s AvgPool windows are the subset {0, s, 2s, ...} of stride-1
    # windows; subsample in time and drop channel padding.
    return mean1[:, ::stride, :][:, :n_out, :c]


def _reference(x, kernel_size, stride):
    """Pure-JAX mirror of the PyTorch forward."""
    h = (kernel_size - 1) // 2
    front = jnp.repeat(x[:, :1, :], h, axis=1)
    end = jnp.repeat(x[:, -1:, :], h, axis=1)
    xp = jnp.concatenate([front, x, end], axis=1)           # (B, L+2h, C)
    lp = xp.shape[1]
    n_out = (lp - kernel_size) // stride + 1
    wins = jnp.stack(
        [xp[:, j * stride:j * stride + kernel_size, :] for j in range(n_out)],
        axis=1,
    )                                                        # (B, n_out, k, C)
    return wins.mean(axis=2)


if __name__ == "__main__":
    key = jax.random.PRNGKey(0)
    B, L, C = 2, 16, 8
    x = jax.random.normal(key, (B, L, C), dtype=jnp.float32)

    for kernel_size, stride in ((5, 1), (7, 2)):
        out = moving_avg(x, kernel_size, stride)
        out = jax.block_until_ready(out)
        ref = _reference(x, kernel_size, stride)
        assert out.shape == ref.shape, (out.shape, ref.shape)
        assert jnp.allclose(out, ref, atol=1e-5, rtol=1e-5)

    print("KERNEL_OK")
</pallas_src>

<mosaic_0001>
module attributes {stable_mosaic.version = 11 : i64} {
  func.func @_moving_avg_kernel(%arg0: i32, %arg1: i32, %arg2: memref<1x16x128xf32, #tpu.memory_space<vmem>>, %arg3: memref<1x16x128xf32, #tpu.memory_space<vmem>>, %arg4: memref<20x128xf32, #tpu.memory_space<vmem>>) attributes {dimension_semantics = [#tpu.dimension_semantics<parallel>, #tpu.dimension_semantics<parallel>], iteration_bounds = array<i64: 2, 1>, scalar_prefetch = 0 : i64, scratch_operands = 1 : i64, tpu.core_type = #tpu.core_type<tc>, window_params = [{transform_indices = @transform_0, window_bounds = array<i64: 1, 16, 128>}, {transform_indices = @transform_1, window_bounds = array<i64: 1, 16, 128>}]} {
    %c0 = arith.constant 0 : index
    %c0_0 = arith.constant 0 : index
    %c0_1 = arith.constant 0 : index
    %0 = vector.load %arg2[%c0, %c0_0, %c0_1] : memref<1x16x128xf32, #tpu.memory_space<vmem>>, vector<1x16x128xf32>
    %1 = vector.shape_cast %0 : vector<1x16x128xf32> to vector<16x128xf32>
    %c2 = arith.constant 2 : index
    %c0_2 = arith.constant 0 : index
    %2 = vector.load %arg4[%c2, %c0_2] : memref<20x128xf32, #tpu.memory_space<vmem>>, vector<16x128xf32>
    tpu.vector_store %arg4[%c2, %c0_2], %1 {strides = array<i32>} : memref<20x128xf32, #tpu.memory_space<vmem>>, vector<16x128xf32>,
    %3 = vector.extract_strided_slice %1 {offsets = [0, 0], sizes = [1, 128], strides = [1, 1]} : vector<16x128xf32> to vector<1x128xf32>
    %4 = vector.extract_strided_slice %1 {offsets = [15, 0], sizes = [1, 128], strides = [1, 1]} : vector<16x128xf32> to vector<1x128xf32>
    %5 = vector.shape_cast %3 : vector<1x128xf32> to vector<1x128xf32>
    %6 = vector.broadcast %5 : vector<1x128xf32> to vector<2x128xf32>
    %c0_3 = arith.constant 0 : index
    %c0_4 = arith.constant 0 : index
    %7 = vector.load %arg4[%c0_3, %c0_4] : memref<20x128xf32, #tpu.memory_space<vmem>>, vector<2x128xf32>
    tpu.vector_store %arg4[%c0_3, %c0_4], %6 {strides = array<i32>} : memref<20x128xf32, #tpu.memory_space<vmem>>, vector<2x128xf32>,
    %8 = vector.shape_cast %4 : vector<1x128xf32> to vector<1x128xf32>
    %9 = vector.broadcast %8 : vector<1x128xf32> to vector<2x128xf32>
    %c18 = arith.constant 18 : index
    %c0_5 = arith.constant 0 : index
    %10 = vector.load %arg4[%c18, %c0_5] : memref<20x128xf32, #tpu.memory_space<vmem>>, vector<2x128xf32>
    tpu.vector_store %arg4[%c18, %c0_5], %9 {strides = array<i32>} : memref<20x128xf32, #tpu.memory_space<vmem>>, vector<2x128xf32>,
    %c0_6 = arith.constant 0 : index
    %c0_7 = arith.constant 0 : index
    %11 = vector.load %arg4[%c0_6, %c0_7] : memref<20x128xf32, #tpu.memory_space<vmem>>, vector<16x128xf32>
    %c1 = arith.constant 1 : index
    %c0_8 = arith.constant 0 : index
    %12 = vector.load %arg4[%c1, %c0_8] : memref<20x128xf32, #tpu.memory_space<vmem>>, vector<16x128xf32>
    %13 = arith.addf %11, %12 : vector<16x128xf32>
    %c2_9 = arith.constant 2 : index
    %c0_10 = arith.constant 0 : index
    %14 = vector.load %arg4[%c2_9, %c0_10] : memref<20x128xf32, #tpu.memory_space<vmem>>, vector<16x128xf32>
    %15 = arith.addf %13, %14 : vector<16x128xf32>
    %c3 = arith.constant 3 : index
    %c0_11 = arith.constant 0 : index
    %16 = vector.load %arg4[%c3, %c0_11] : memref<20x128xf32, #tpu.memory_space<vmem>>, vector<16x128xf32>
    %17 = arith.addf %15, %16 : vector<16x128xf32>
    %c4 = arith.constant 4 : index
    %c0_12 = arith.constant 0 : index
    %18 = vector.load %arg4[%c4, %c0_12] : memref<20x128xf32, #tpu.memory_space<vmem>>, vector<16x128xf32>
    %19 = arith.addf %17, %18 : vector<16x128xf32>
    %cst = arith.constant 2.000000e-01 : f32
    %20 = vector.broadcast %cst : f32 to vector<16x128xf32>
    %21 = arith.mulf %19, %20 : vector<16x128xf32>
    %c0_13 = arith.constant 0 : index
    %c0_14 = arith.constant 0 : index
    %c0_15 = arith.constant 0 : index
    %22 = vector.load %arg3[%c0_13, %c0_14, %c0_15] : memref<1x16x128xf32, #tpu.memory_space<vmem>>, vector<1x16x128xf32>
    %23 = vector.shape_cast %22 : vector<1x16x128xf32> to vector<16x128xf32>
    %24 = vector.shape_cast %21 : vector<16x128xf32> to vector<1x16x128xf32>
    tpu.vector_store %arg3[%c0_13, %c0_14, %c0_15], %24 {strides = array<i32>} : memref<1x16x128xf32, #tpu.memory_space<vmem>>, vector<1x16x128xf32>,
    return
  }
  func.func @transform_0(%arg0: i32, %arg1: i32) -> (i32, i32, i32) {
    %c0_i32 = arith.constant 0 : i32
    %c0_i32_0 = arith.constant 0 : i32
    return %arg0, %c0_i32, %arg1 : i32, i32, i32
  }
  func.func @transform_1(%arg0: i32, %arg1: i32) -> (i32, i32, i32) {
    %c0_i32 = arith.constant 0 : i32
    %c0_i32_0 = arith.constant 0 : i32
    return %arg0, %c0_i32, %arg1 : i32, i32, i32
  }
}

</mosaic_0001>

<llo_original>
// kernel: tpu_custom_call.1
$region0: #{tpu_custom_call.1}
  #allocation0 [shape = 'u32[]', space=smem, size = 0x4, offset = 0x4, fixed_abs, tag = 'smem constant byte address 0x4 - core index']
  #allocation1 [shape = 'u32[144,128]{1,0:T(1,128)}', space=vmem, size = 0x12000, scoped, tag = 'internal scratch']
  #allocation2 [shape = 'f32[20,128]{1,0:T(8,128)}', space=vmem, size = 0x3000, scoped, tag = 'scratch operand']
  %s0 = inlined_call_operand.hbm [shape: f32[2,16,128], index: 0, kind: input, shape index: {}]
  %s1 = inlined_call_operand.hbm [shape: f32[2,16,128], index: 1, kind: output, shape index: {}]
  %s2 = sld [smem:[#allocation0]]
  $region41: #{tpu_custom_call.1} parent=0
    _
  %s4 = ssub.s32 1, %s2
  %s5 = scalar_select 0, %s4, %s2
  $region1: #{tpu_custom_call.1} parent=0
    #allocation3 [shape = 'u8[16384]{0}', space=vmem, size = 0x4000, scoped, tag = 'input window, operand 0']
    #allocation4 [shape = 's32[2]{0}', space=sflag, size = 0x8, scoped, tag = 'scoped memory for tpu_custom_call.1']
    #allocation5 [shape = 's32[2]{0}', space=sflag, size = 0x8, scoped, tag = 'scoped memory for tpu_custom_call.1']
    #allocation6 [shape = 'u8[16384]{0}', space=vmem, size = 0x4000, scoped, tag = 'output window, operand 0']
    %6 = vsyncpa [#allocation4], 0
    %s7 = scalar_lea.sflag [#allocation4], 1
    %8 = vsyncpa %s7, 0
    %9 = vsyncpa [#allocation5], 0
    %s10 = scalar_lea.sflag [#allocation5], 1
    %11 = vsyncpa %s10, 0
    loop: start=0, step=1, limit=4
    $region2: #{tpu_custom_call.1} parent=1 // loop_pre_header
      _
    $region3: #{tpu_custom_call.1} parent=1 // loop_header
      %s13 = sphi 0, %s17
      %p14 = scmp.ge.s32.totalorder %s13, 4
      %s20 = sphi 0, %s32
      %s21 = sphi 0, %s28
      %s22 = sphi 0, %s20
      %s23 = sphi 0, %s21
      %s24 = sphi 0, %s22
      %s25 = sphi 0, %s23
      %s37 = sphi 0, %s39
      %s40 = sphi 0, %s37
      %s41 = sphi 0, %s40
      %s57 = sphi 0, %s41
      %s65 = sphi 0, %s67
      %s68 = sphi 0, %s65
      %s69 = sphi 0, %s68
      %s85 = sphi 0, %s69
    $region4: #{tpu_custom_call.1} parent=1 // loop_header_branch
      %16 = sbr.rel (%p14) target = $region8
    $region5: #{tpu_custom_call.1} parent=1 // loop_body
      %s18 = ssub.s32 %s13, 1
      %s19 = ssub.s32 %s13, 2
      %s26 = sadd.s32 1, %s21
      %p27 = scmp.ge.s32.totalorder %s26, 1
      %s28 = scalar_select %p27, 0, %s26
      %s29 = sadd.s32 1, %s20
      %s30 = scalar_select %p27, %s29, %s20
      %p31 = scmp.ge.s32.totalorder %s30, 2
      %s32 = scalar_select %p31, 0, %s30
      %s33 = ssub.s32 %s20, %s32
      %s34 = ssub.s32 %s21, %s28
      %s35 = sor.u32 %s33, %s34
      %p36 = scmp.eq.s32.totalorder %s35, 0
      %s38 = sadd.s32 %s37, 1
      %s39 = scalar_select %p36, %s37, %s38
      %p42 = pneg %p36
      %p43 = scmp.eq.s32.totalorder %s13, 1
      %p44 = por %p42, %p43
      %p45 = scmp.ne.s32.totalorder %s37, %s40
      %p46 = scmp.eq.s32.totalorder %s13, 0
      %p47 = por %p45, %p46
      %p48 = scmp.ne.s32.totalorder %s37, %s40
      %p49 = scmp.eq.s32.totalorder %s18, 1
      %p50 = por %p48, %p49
      %p51 = scmp.ne.s32.totalorder %s40, %s41
      %p52 = scmp.eq.s32.totalorder %s18, 0
      %p53 = por %p51, %p52
      %p54 = scmp.ne.s32.totalorder %s40, %s41
      %p55 = scmp.eq.s32.totalorder %s19, 1
      %p56 = por %p54, %p55
      %p58 = scmp.ne.s32.totalorder %s41, %s57
      %p59 = scmp.eq.s32.totalorder %s19, 0
      %p60 = por %p58, %p59
      %s61 = ssub.s32 %s20, %s32
      %s62 = ssub.s32 %s21, %s28
      %s63 = sor.u32 %s61, %s62
      %p64 = scmp.eq.s32.totalorder %s63, 0
      %s66 = sadd.s32 %s65, 1
      %s67 = scalar_select %p64, %s65, %s66
      %p70 = pneg %p64
      %p71 = scmp.eq.s32.totalorder %s13, 1
      %p72 = por %p70, %p71
      %p73 = scmp.ne.s32.totalorder %s65, %s68
      %p74 = scmp.eq.s32.totalorder %s13, 0
      %p75 = por %p73, %p74
      %p76 = scmp.ne.s32.totalorder %s65, %s68
      %p77 = scmp.eq.s32.totalorder %s18, 1
      %p78 = por %p76, %p77
      %p79 = scmp.ne.s32.totalorder %s68, %s69
      %p80 = scmp.eq.s32.totalorder %s18, 0
      %p81 = por %p79, %p80
      %p82 = scmp.ne.s32.totalorder %s68, %s69
      %p83 = scmp.eq.s32.totalorder %s19, 1
      %p84 = por %p82, %p83
      %p86 = scmp.ne.s32.totalorder %s69, %s85
      %p87 = scmp.eq.s32.totalorder %s19, 0
      %p88 = por %p86, %p87
      %p89 = scmp.le.s32.totalorder 1, %s13
      %p90 = scmp.lt.s32.totalorder %s13, 3
      %p91 = pnand %p89, %p90
      %p92 = pneg %p91
      // Predicated region
      $region9: #{tpu_custom_call.1} parent=5 // pred_check
        _
      $region10: #{tpu_custom_call.1} parent=5 // pred_check_branch
        %94 = sbr.rel (%p91) target = $region12
      $region11: #{tpu_custom_call.1} parent=5 // pred_region
        %s95 = ssub.s32 %s13, 1
      $region12: #{tpu_custom_call.1} parent=5 // pred_fallthru
        _
      %p96 = scmp.lt.s32.totalorder %s13, 2
      // Predicated region
      $region13: #{tpu_custom_call.1} parent=5 // pred_check
        %p97 = pneg %p96
      $region14: #{tpu_custom_call.1} parent=5 // pred_check_branch
        %99 = sbr.rel (%p97) target = $region16
      $region15: #{tpu_custom_call.1} parent=5 // pred_region
        // Predicated region
        $region17: #{tpu_custom_call.1} parent=15 // pred_check
          %p100 = pneg %p47
        $region18: #{tpu_custom_call.1} parent=15 // pred_check_branch
          %102 = sbr.rel (%p100) target = $region20
        $region19: #{tpu_custom_call.1} parent=15 // pred_region
          %s103 = sand.u32 %s37, 1
          %s104 = scalar_lea.sflag [#allocation4], %s103
          %s105 = sand.u32 %s37, 1
          %s106 = smul.addr %s105, 16
          %s107 = scalar_lea.vmem [#allocation3], %s106
          %s109 = ssub.s32 256, 256
          %110 = vsyncadd %s104, %s109
          %s111 = smul.addr %s20, 2
          %s112 = sadd.s32 %s21, %s111
          %s113 = smul.addr %s112, 128
          %s114 = scalar_lea.hbm %s0, %s113
          %s115 = sshll.u32 %s107, 4
          %s116 = int_to_ptr.vmem [resolvable:$true] %s115
          %121 = dma.hbm_to_vmem [thread:$0]  %s114, 256, %s116, %s104, 128, 128, 8
        $region20: #{tpu_custom_call.1} parent=15 // pred_fallthru
          _
      $region16: #{tpu_custom_call.1} parent=5 // pred_fallthru
        _
      %p122 = scmp.le.s32.totalorder 1, %s13
      %p123 = scmp.lt.s32.totalorder %s13, 3
      %p124 = pnand %p122, %p123
      %p125 = pneg %p124
      // Predicated region
      $region21: #{tpu_custom_call.1} parent=5 // pred_check
        _
      $region22: #{tpu_custom_call.1} parent=5 // pred_check_branch
        %127 = sbr.rel (%p124) target = $region24
      $region23: #{tpu_custom_call.1} parent=5 // pred_region
        %s128 = ssub.s32 %s13, 1
        %s129 = sand.u32 %s40, 1
        %s130 = scalar_lea.sflag [#allocation4], %s129
        %s131 = sand.u32 %s40, 1
        %s132 = smul.addr %s131, 16
        %s133 = scalar_lea.vmem [#allocation3], %s132
        // Predicated region
        $region25: #{tpu_custom_call.1} parent=23 // pred_check
          %p134 = pneg %p53
        $region26: #{tpu_custom_call.1} parent=23 // pred_check_branch
          %136 = sbr.rel (%p134) target = $region28
        $region27: #{tpu_custom_call.1} parent=23 // pred_region
          %137 = dma.done %s130, 256
        $region28: #{tpu_custom_call.1} parent=23 // pred_fallthru
          _
        %s138 = sand.u32 %s40, 1
        %s139 = scalar_lea.sflag [#allocation4], %s138
        %s140 = sand.u32 %s40, 1
        %s141 = smul.addr %s140, 16
        %s142 = scalar_lea.vmem [#allocation3], %s141
        %p143 = pneg %p53
        %p144 = pneg %p50
        %p145 = pneg %p81
        %p146 = pneg %p78
        %s147 = sand.u32 %s68, 1
        %s148 = scalar_lea.sflag [#allocation5], %s147
        %s149 = sand.u32 %s68, 1
        %s150 = smul.addr %s149, 16
        %s151 = scalar_lea.vmem [#allocation6], %s150
        %v152 = vld [vmem:[%s133] sm:$0xff]
        %v153 = vld [vmem:[%s133 + $0x8] sm:$0xff]
        %154 = vst [vmem:[#allocation2 + $0x2] sm:$0xff] %v152
        %155 = vst [vmem:[#allocation2 + $0xa] sm:$0xff] %v153
        %v156 = vlaneseq
        %v157 = vshrl.u32 %v156, 7
        %v158 = vsub.s32 0, %v157
        %v159 = vrot.slane %v152, %v158
        %160 = vst [vmem:[#allocation2] sm:$0x3] %v159
        %v161 = vlaneseq
        %v162 = vshrl.u32 %v161, 7
        %v163 = vsub.s32 7, %v162
        %v164 = vrot.slane %v153, %v163
        %165 = vst [vmem:[#allocation2 + $0x12] sm:$0x3] %v164
        %v166 = vld [vmem:[#allocation2] sm:$0xff]
        %v167 = vld [vmem:[#allocation2 + $0x8] sm:$0xff]
        %v168 = vld [vmem:[#allocation2 + $0x1] sm:$0xff]
        %v169 = vld [vmem:[#allocation2 + $0x9] sm:$0xff]
        %v170 = vadd.f32 %v166, %v168
        %v171 = vadd.f32 %v167, %v169
        %v172 = vld [vmem:[#allocation2 + $0x2] sm:$0xff]
        %v173 = vld [vmem:[#allocation2 + $0xa] sm:$0xff]
        %v174 = vadd.f32 %v170, %v172
        %v175 = vadd.f32 %v171, %v173
        %v176 = vld [vmem:[#allocation2 + $0x3] sm:$0xff]
        %v177 = vld [vmem:[#allocation2 + $0xb] sm:$0xff]
        %v178 = vadd.f32 %v174, %v176
        %v179 = vadd.f32 %v175, %v177
        %v180 = vld [vmem:[#allocation2 + $0x4] sm:$0xff]
        %v181 = vld [vmem:[#allocation2 + $0xc] sm:$0xff]
        %v182 = vadd.f32 %v178, %v180
        %v183 = vadd.f32 %v179, %v181
        %v184 = vmul.f32 %v182, 0.2
        %v185 = vmul.f32 %v183, 0.2
        %186 = vst [vmem:[%s151] sm:$0xff] %v184
        %187 = vst [vmem:[%s151 + $0x8] sm:$0xff] %v185
        %s188 = sand.u32 %s68, 1
        %s189 = scalar_lea.sflag [#allocation5], %s188
        %s190 = sand.u32 %s68, 1
        %s191 = smul.addr %s190, 16
        %s192 = scalar_lea.vmem [#allocation6], %s191
        // Predicated region
        $region29: #{tpu_custom_call.1} parent=23 // pred_check
          %p193 = pneg %p78
        $region30: #{tpu_custom_call.1} parent=23 // pred_check_branch
          %195 = sbr.rel (%p193) target = $region32
        $region31: #{tpu_custom_call.1} parent=23 // pred_region
          %s197 = ssub.s32 256, 256
          %198 = vsyncadd %s189, %s197
          %s199 = smul.addr %s22, 2
          %s200 = sadd.s32 %s23, %s199
          %s201 = smul.addr %s200, 128
          %s202 = scalar_lea.hbm %s1, %s201
          %s203 = sshll.u32 %s192, 4
          %s204 = int_to_ptr.vmem [resolvable:$true] %s203
          %209 = dma.vmem_to_hbm [thread:$0]  %s204, 256, %s202, %s189, 128, 128, 8
        $region32: #{tpu_custom_call.1} parent=23 // pred_fallthru
          _
      $region24: #{tpu_custom_call.1} parent=5 // pred_fallthru
        _
      %p210 = scmp.le.s32.totalorder 2, %s13
      // Predicated region
      $region33: #{tpu_custom_call.1} parent=5 // pred_check
        %p211 = pneg %p210
      $region34: #{tpu_custom_call.1} parent=5 // pred_check_branch
        %213 = sbr.rel (%p211) target = $region36
      $region35: #{tpu_custom_call.1} parent=5 // pred_region
        %s214 = ssub.s32 %s13, 2
        // Predicated region
        $region37: #{tpu_custom_call.1} parent=35 // pred_check
          %p215 = pneg %p84
        $region38: #{tpu_custom_call.1} parent=35 // pred_check_branch
          %217 = sbr.rel (%p215) target = $region40
        $region39: #{tpu_custom_call.1} parent=35 // pred_region
          %s218 = sand.u32 %s69, 1
          %s219 = scalar_lea.sflag [#allocation5], %s218
          %s220 = sand.u32 %s69, 1
          %s221 = smul.addr %s220, 16
          %s222 = scalar_lea.vmem [#allocation6], %s221
          %223 = dma.done %s219, 256
        $region40: #{tpu_custom_call.1} parent=35 // pred_fallthru
          _
      $region36: #{tpu_custom_call.1} parent=5 // pred_fallthru
        _
    $region6: #{tpu_custom_call.1} parent=1 // loop_footer
      %s17 = sadd.s32 1, %s13
    $region7: #{tpu_custom_call.1} parent=1 // loop_footer_branch
      %12 = sbr.rel target = $region3
    $region8: #{tpu_custom_call.1} parent=1 // loop_exit
      _
    %224 = vsyncpa [#allocation4], 1
    %s225 = scalar_lea.sflag [#allocation4], 1
    %226 = vsyncpa %s225, 1
    %227 = vsyncpa [#allocation5], 1
    %s228 = scalar_lea.sflag [#allocation5], 1
    %229 = vsyncpa %s228, 1

</llo_original>
